<compile_context>
chip_gen: v7x
topology: tpu7x:2x2x1
jax: 0.10.0
libtpu: 0.0.40
codegen_flags: <defaults>
</compile_context>

<pallas_src>
import jax
import jax.numpy as jnp
from jax.experimental import pallas as pl
from jax.experimental.pallas import tpu as pltpu


def _make_basic_block_kernel(H, WC):
    """Builds the kernel for image height H and lane width WC = W*C."""

    def kernel(x_ref, w1_ref, w2_ref, b_ref, o_ref):
        # x_ref/o_ref blocks: (tile_rows, WC) lane-dense rows of several images.
        x = x_ref[...].astype(jnp.float32)          # read once; also the residual
        rows = x.shape[0]                           # static: multiple of H
        # Image-local row index (tiles start at image boundaries).
        r = jax.lax.broadcasted_iota(jnp.int32, x.shape, 0) % H

        def conv3x3(inp, w_ref):
            # H-direction taps via circular sublane rolls (XLU) + boundary masks.
            # Row h of `up` holds inp[h-1]; row h of `down` holds inp[h+1]; the
            # 1-pixel H halo (and cross-image leakage) is zeroed by the mask.
            up = jnp.where(r >= 1, pltpu.roll(inp, shift=1, axis=0), 0.0)
            down = jnp.where(r <= H - 2, pltpu.roll(inp, shift=rows - 1, axis=0), 0.0)
            # W-direction taps (incl. W halo zeros) are folded into the banded
            # weight.  Three accumulating MXU matmuls (K = WC each) avoid
            # materializing a 3x-wide lhs copy.  bf16 operands, f32 accumulate.
            acc = jnp.dot(up.astype(jnp.bfloat16), w_ref[0:WC, :],
                          preferred_element_type=jnp.float32)
            acc += jnp.dot(inp.astype(jnp.bfloat16), w_ref[WC:2 * WC, :],
                           preferred_element_type=jnp.float32)
            acc += jnp.dot(down.astype(jnp.bfloat16), w_ref[2 * WC:3 * WC, :],
                           preferred_element_type=jnp.float32)
            return acc

        # conv1 -> BN1 (scale folded into w1 cols) -> ReLU        (f32 epilogue)
        y = jnp.maximum(conv3x3(x, w1_ref) + b_ref[0:1, :], 0.0)
        # conv2 -> BN2 (folded) -> + residual -> ReLU
        out = conv3x3(y, w2_ref) + b_ref[1:2, :] + x
        o_ref[...] = jnp.maximum(out, 0.0).astype(o_ref.dtype)

    return kernel


def _band_conv_weights(w_hwio, W):
    """(3, 3, Cin, Cout) conv kernel -> (3*W*Cin, W*Cout) banded matmul weight.

    Row index  = dy * (W*Cin) + w_in * Cin + ci   (dy=0 multiplies x[h-1] rows)
    Col index  = w_out * Cout + co
    Block (w_in, w_out) = w_hwio[dy, w_in - w_out + 1] when |w_in - w_out| <= 1,
    zero otherwise (encodes the W-direction taps including the zero pad).
    """
    _, _, cin, cout = w_hwio.shape
    wi = jnp.arange(W)[:, None]
    wo = jnp.arange(W)[None, :]
    d = wi - wo
    valid = (jnp.abs(d) <= 1).astype(w_hwio.dtype)
    dx = jnp.clip(d + 1, 0, 2)
    blocks = w_hwio[:, dx, :, :] * valid[None, :, :, None, None]   # (3, W, W, Cin, Cout)
    blocks = jnp.transpose(blocks, (0, 1, 3, 2, 4))                # (3, W, Cin, W, Cout)
    return blocks.reshape(3 * W * cin, W * cout)


def _choose_images_per_tile(N, H, max_tile_rows=512):
    """Largest divisor of N whose row block fits the cap while keeping >= 2
    grid steps when N >= 2 (so both v7x TensorCores get work)."""
    best = 1
    for ipt in range(1, N + 1):
        if N % ipt:
            continue
        if ipt * H > max_tile_rows:
            break
        if N == 1 or N // ipt >= 2:
            best = ipt
    return best


@jax.jit
def basic_block_nhwc(x_nhwc, w1_hwio, scale1, bias1, w2_hwio, scale2, bias2):
    """x: (N, H, W, C) float32.  w*_hwio: (3, 3, Cin, Cout).  BN pre-folded."""
    N, H, W, C = x_nhwc.shape
    assert (w1_hwio.shape[2] == C and w1_hwio.shape[3] == C and
            w2_hwio.shape[2] == C and w2_hwio.shape[3] == C), \
        "stride=1 / downsample=None => Cin == Cout"

    WC = W * C
    x2d = x_nhwc.reshape(N * H, WC)                 # batch folded into M rows

    # Banded weights with eval-mode BN scales folded into the columns; bf16
    # MXU operands (f32 accumulation in the kernel).
    wb1 = (_band_conv_weights(w1_hwio, W) * jnp.tile(scale1, W)[None, :]).astype(jnp.bfloat16)
    wb2 = (_band_conv_weights(w2_hwio, W) * jnp.tile(scale2, W)[None, :]).astype(jnp.bfloat16)
    # Both per-channel biases packed into one (2, WC) input (single DMA/spec).
    bias = jnp.stack([jnp.tile(bias1, W), jnp.tile(bias2, W)], axis=0).astype(jnp.float32)

    ipt = _choose_images_per_tile(N, H)
    tile_rows = ipt * H
    if tile_rows % 8 != 0:                          # (8,128) tiling constraint
        tile_rows = N * H                           # full-extent block is always legal
    grid = (N * H) // tile_rows

    kernel = _make_basic_block_kernel(H, WC)

    grid_spec = pltpu.PrefetchScalarGridSpec(
        num_scalar_prefetch=0,
        grid=(grid,),
        in_specs=[
            pl.BlockSpec((tile_rows, WC), lambda m: (m, 0)),   # x (also residual)
            pl.BlockSpec((3 * WC, WC), lambda m: (0, 0)),      # banded w1 (BN1 folded)
            pl.BlockSpec((3 * WC, WC), lambda m: (0, 0)),      # banded w2 (BN2 folded)
            pl.BlockSpec((2, WC), lambda m: (0, 0)),           # [bias1; bias2]
        ],
        out_specs=pl.BlockSpec((tile_rows, WC), lambda m: (m, 0)),
    )

    out2d = pl.pallas_call(
        kernel,
        out_shape=jax.ShapeDtypeStruct((N * H, WC), x_nhwc.dtype),
        grid_spec=grid_spec,
        compiler_params=pltpu.CompilerParams(
            dimension_semantics=("parallel",)),
    )(x2d, wb1, wb2, bias)
    return out2d.reshape(N, H, W, C)


def basic_block_nchw(x_nchw, params):
    """PyTorch-convention entry point: x is NCHW float32."""
    x = jnp.transpose(x_nchw, (0, 2, 3, 1))        # NCHW -> NHWC
    out = basic_block_nhwc(x, params["w1_hwio"], params["scale1"], params["bias1"],
                           params["w2_hwio"], params["scale2"], params["bias2"])
    return jnp.transpose(out, (0, 3, 1, 2))        # NHWC -> NCHW


def _fold_bn(gamma, beta, mean, var, eps=1e-5):
    scale = gamma / jnp.sqrt(var + eps)
    bias = beta - mean * scale
    return scale, bias


def _reference_nhwc_f32(x, w1_hwio, s1, b1, w2_hwio, s2, b2):
    """Pure-f32 plain-JAX reference (semantic sanity check)."""
    dn = ("NHWC", "HWIO", "NHWC")
    y = jax.lax.conv_general_dilated(x, w1_hwio, (1, 1), "SAME", dimension_numbers=dn)
    y = jnp.maximum(y * s1 + b1, 0.0)
    z = jax.lax.conv_general_dilated(y, w2_hwio, (1, 1), "SAME", dimension_numbers=dn)
    z = z * s2 + b2 + x
    return jnp.maximum(z, 0.0)


def _reference_nhwc_bf16(x, w1_hwio, scale1, bias1, w2_hwio, scale2, bias2):
    """Reference with the same bf16-operand / f32-accumulate rounding as the kernel."""
    dn = ("NHWC", "HWIO", "NHWC")
    w1s = (w1_hwio * scale1[None, None, None, :]).astype(jnp.bfloat16)
    w2s = (w2_hwio * scale2[None, None, None, :]).astype(jnp.bfloat16)
    y = jax.lax.conv_general_dilated(x.astype(jnp.bfloat16), w1s, (1, 1), "SAME",
                                     dimension_numbers=dn,
                                     preferred_element_type=jnp.float32)
    y = jnp.maximum(y + bias1[None, None, None, :], 0.0)
    z = jax.lax.conv_general_dilated(y.astype(jnp.bfloat16), w2s, (1, 1), "SAME",
                                     dimension_numbers=dn,
                                     preferred_element_type=jnp.float32)
    z = z + bias2[None, None, None, :] + x
    return jnp.maximum(z, 0.0)


if __name__ == "__main__":
    # Small shapes consistent with BasicBlock(inplanes=8, planes=8, stride=1).
    # C=8, W=16 makes W*C = 128, i.e. exactly one lane-dense vreg row.
    N, C, H, W = 2, 8, 16, 16
    key = jax.random.PRNGKey(0)
    k = jax.random.split(key, 11)

    x_nchw = jax.random.normal(k[0], (N, C, H, W), jnp.float32)

    # Deterministic parameter init (PyTorch shapes: conv (Cout, Cin, 3, 3)).
    fan_in = C * 9
    w1_oihw = jax.random.normal(k[1], (C, C, 3, 3), jnp.float32) * (2.0 / fan_in) ** 0.5
    w2_oihw = jax.random.normal(k[2], (C, C, 3, 3), jnp.float32) * (2.0 / fan_in) ** 0.5
    gamma1 = 1.0 + 0.1 * jax.random.normal(k[3], (C,), jnp.float32)
    beta1 = 0.1 * jax.random.normal(k[4], (C,), jnp.float32)
    mean1 = 0.1 * jax.random.normal(k[5], (C,), jnp.float32)
    var1 = jnp.abs(jax.random.normal(k[6], (C,), jnp.float32)) + 0.5
    gamma2 = 1.0 + 0.1 * jax.random.normal(k[7], (C,), jnp.float32)
    beta2 = 0.1 * jax.random.normal(k[8], (C,), jnp.float32)
    mean2 = 0.1 * jax.random.normal(k[9], (C,), jnp.float32)
    var2 = jnp.abs(jax.random.normal(k[10], (C,), jnp.float32)) + 0.5

    scale1, bias1 = _fold_bn(gamma1, beta1, mean1, var1)
    scale2, bias2 = _fold_bn(gamma2, beta2, mean2, var2)

    params = {
        "w1_hwio": jnp.transpose(w1_oihw, (2, 3, 1, 0)),   # OIHW -> HWIO
        "w2_hwio": jnp.transpose(w2_oihw, (2, 3, 1, 0)),
        "scale1": scale1, "bias1": bias1,
        "scale2": scale2, "bias2": bias2,
    }

    out_nchw = basic_block_nchw(x_nchw, params)
    out_nchw = jax.block_until_ready(out_nchw)
    assert out_nchw.shape == (N, C, H, W)

    # Correctness checks against plain-JAX references.
    x_nhwc = jnp.transpose(x_nchw, (0, 2, 3, 1))
    ref_bf16 = _reference_nhwc_bf16(x_nhwc, params["w1_hwio"], scale1, bias1,
                                    params["w2_hwio"], scale2, bias2)
    ref_bf16_nchw = jnp.transpose(ref_bf16, (0, 3, 1, 2))
    err_bf16 = float(jnp.max(jnp.abs(out_nchw - ref_bf16_nchw)))
    # Tight check vs a reference with identical bf16-operand rounding.
    assert jnp.allclose(out_nchw, ref_bf16_nchw, atol=1e-2, rtol=1e-2), err_bf16

    ref_f32 = _reference_nhwc_f32(x_nhwc, params["w1_hwio"],
                                  scale1.reshape(1, 1, 1, C), bias1.reshape(1, 1, 1, C),
                                  params["w2_hwio"],
                                  scale2.reshape(1, 1, 1, C), bias2.reshape(1, 1, 1, C))
    ref_f32_nchw = jnp.transpose(ref_f32, (0, 3, 1, 2))
    err_f32 = float(jnp.max(jnp.abs(out_nchw - ref_f32_nchw)))
    # Loose semantic check vs the pure-f32 reference (bf16 MXU operand rounding).
    assert jnp.allclose(out_nchw, ref_f32_nchw, atol=1e-1, rtol=1e-1), err_f32

    print("KERNEL_OK")
</pallas_src>

<mosaic_0001>
module attributes {stable_mosaic.version = 11 : i64} {
  func.func @kernel(%arg0: i32, %arg1: memref<16x128xf32, #tpu.memory_space<vmem>>, %arg2: memref<384x128xbf16, #tpu.memory_space<vmem>>, %arg3: memref<384x128xbf16, #tpu.memory_space<vmem>>, %arg4: memref<2x128xf32, #tpu.memory_space<vmem>>, %arg5: memref<16x128xf32, #tpu.memory_space<vmem>>) attributes {dimension_semantics = [#tpu.dimension_semantics<parallel>], iteration_bounds = array<i64: 2>, scalar_prefetch = 0 : i64, scratch_operands = 0 : i64, tpu.core_type = #tpu.core_type<tc>, window_params = [{transform_indices = @transform_0, window_bounds = array<i64: 16, 128>}, {pipeline_mode = #tpu.pipeline_mode<synchronous>, transform_indices = @transform_1, window_bounds = array<i64: 384, 128>}, {pipeline_mode = #tpu.pipeline_mode<synchronous>, transform_indices = @transform_2, window_bounds = array<i64: 384, 128>}, {pipeline_mode = #tpu.pipeline_mode<synchronous>, transform_indices = @transform_3, window_bounds = array<i64: 2, 128>}, {transform_indices = @transform_4, window_bounds = array<i64: 16, 128>}]} {
    %c0 = arith.constant 0 : index
    %c0_0 = arith.constant 0 : index
    %0 = vector.load %arg1[%c0, %c0_0] : memref<16x128xf32, #tpu.memory_space<vmem>>, vector<16x128xf32>
    %1 = tpu.iota {dimensions = array<i32: 0>} : vector<16x128xi32>
    %c16_i32 = arith.constant 16 : i32
    %c0_i32 = arith.constant 0 : i32
    %2 = arith.cmpi eq, %c16_i32, %c0_i32 : i32
    %c1_i32 = arith.constant 1 : i32
    %3 = arith.select %2, %c1_i32, %c16_i32 : i32
    %4 = vector.broadcast %3 : i32 to vector<16x128xi32>
    %5 = arith.remsi %1, %4 : vector<16x128xi32>
    %c0_i32_1 = arith.constant 0 : i32
    %6 = vector.broadcast %c0_i32_1 : i32 to vector<16x128xi32>
    %7 = arith.cmpi ne, %5, %6 : vector<16x128xi32>
    %c0_i32_2 = arith.constant 0 : i32
    %8 = vector.broadcast %c0_i32_2 : i32 to vector<16x128xi32>
    %9 = arith.cmpi slt, %5, %8 : vector<16x128xi32>
    %c0_i32_3 = arith.constant 0 : i32
    %10 = arith.cmpi slt, %3, %c0_i32_3 : i32
    %11 = vector.broadcast %10 : i1 to vector<16x128xi1>
    %12 = vector.broadcast %11 : vector<16x128xi1> to vector<16x128xi1>
    %13 = arith.xori %9, %12 : vector<16x128xi1>
    %14 = arith.andi %13, %7 : vector<16x128xi1>
    %15 = vector.broadcast %3 : i32 to vector<16x128xi32>
    %16 = arith.addi %5, %15 : vector<16x128xi32>
    %17 = arith.select %14, %16, %5 : vector<16x128xi1>, vector<16x128xi32>
    %c1_i32_4 = arith.constant 1 : i32
    %18 = vector.broadcast %c1_i32_4 : i32 to vector<16x128xi32>
    %19 = arith.cmpi sge, %17, %18 : vector<16x128xi32>
    %c1_i32_5 = arith.constant 1 : i32
    %20 = tpu.dynamic_rotate %0 by %c1_i32_5 dim 0 : vector<16x128xf32>, i32 -> vector<16x128xf32>
    %cst = arith.constant 0.000000e+00 : f32
    %21 = vector.broadcast %cst : f32 to vector<16x128xf32>
    %22 = arith.select %19, %20, %21 : vector<16x128xi1>, vector<16x128xf32>
    %c14_i32 = arith.constant 14 : i32
    %23 = vector.broadcast %c14_i32 : i32 to vector<16x128xi32>
    %24 = arith.cmpi sle, %17, %23 : vector<16x128xi32>
    %c15_i32 = arith.constant 15 : i32
    %25 = tpu.dynamic_rotate %0 by %c15_i32 dim 0 : vector<16x128xf32>, i32 -> vector<16x128xf32>
    %cst_6 = arith.constant 0.000000e+00 : f32
    %26 = vector.broadcast %cst_6 : f32 to vector<16x128xf32>
    %27 = arith.select %24, %25, %26 : vector<16x128xi1>, vector<16x128xf32>
    %28 = arith.truncf %22 : vector<16x128xf32> to vector<16x128xbf16>
    %c0_7 = arith.constant 0 : index
    %c0_8 = arith.constant 0 : index
    %29 = vector.load %arg2[%c0_7, %c0_8] : memref<384x128xbf16, #tpu.memory_space<vmem>>, vector<128x128xbf16>
    %cst_9 = arith.constant dense<0.000000e+00> : vector<16x128xf32>
    %30 = tpu.matmul %28, %29, %cst_9 {dimension_numbers = #tpu.dot_dimension_numbers<[1], [0], [0], [1], [0, 0, 1, 1], [], []>} : vector<16x128xbf16>, vector<128x128xbf16>, vector<16x128xf32> -> vector<16x128xf32>
    %31 = arith.truncf %0 : vector<16x128xf32> to vector<16x128xbf16>
    %c128 = arith.constant 128 : index
    %c0_10 = arith.constant 0 : index
    %32 = vector.load %arg2[%c128, %c0_10] : memref<384x128xbf16, #tpu.memory_space<vmem>>, vector<128x128xbf16>
    %cst_11 = arith.constant dense<0.000000e+00> : vector<16x128xf32>
    %33 = tpu.matmul %31, %32, %cst_11 {dimension_numbers = #tpu.dot_dimension_numbers<[1], [0], [0], [1], [0, 0, 1, 1], [], []>} : vector<16x128xbf16>, vector<128x128xbf16>, vector<16x128xf32> -> vector<16x128xf32>
    %34 = arith.addf %30, %33 : vector<16x128xf32>
    %35 = arith.truncf %27 : vector<16x128xf32> to vector<16x128xbf16>
    %c256 = arith.constant 256 : index
    %c0_12 = arith.constant 0 : index
    %36 = vector.load %arg2[%c256, %c0_12] : memref<384x128xbf16, #tpu.memory_space<vmem>>, vector<128x128xbf16>
    %cst_13 = arith.constant dense<0.000000e+00> : vector<16x128xf32>
    %37 = tpu.matmul %35, %36, %cst_13 {dimension_numbers = #tpu.dot_dimension_numbers<[1], [0], [0], [1], [0, 0, 1, 1], [], []>} : vector<16x128xbf16>, vector<128x128xbf16>, vector<16x128xf32> -> vector<16x128xf32>
    %38 = arith.addf %34, %37 : vector<16x128xf32>
    %c0_14 = arith.constant 0 : index
    %c0_15 = arith.constant 0 : index
    %39 = vector.load %arg4[%c0_14, %c0_15] : memref<2x128xf32, #tpu.memory_space<vmem>>, vector<1x128xf32>
    %40 = vector.broadcast %39 : vector<1x128xf32> to vector<16x128xf32>
    %41 = arith.addf %38, %40 : vector<16x128xf32>
    %cst_16 = arith.constant 0.000000e+00 : f32
    %42 = vector.broadcast %cst_16 : f32 to vector<16x128xf32>
    %43 = arith.maximumf %41, %42 : vector<16x128xf32>
    %c1_i32_17 = arith.constant 1 : i32
    %44 = vector.broadcast %c1_i32_17 : i32 to vector<16x128xi32>
    %45 = arith.cmpi sge, %17, %44 : vector<16x128xi32>
    %c1_i32_18 = arith.constant 1 : i32
    %46 = tpu.dynamic_rotate %43 by %c1_i32_18 dim 0 : vector<16x128xf32>, i32 -> vector<16x128xf32>
    %cst_19 = arith.constant 0.000000e+00 : f32
    %47 = vector.broadcast %cst_19 : f32 to vector<16x128xf32>
    %48 = arith.select %45, %46, %47 : vector<16x128xi1>, vector<16x128xf32>
    %c14_i32_20 = arith.constant 14 : i32
    %49 = vector.broadcast %c14_i32_20 : i32 to vector<16x128xi32>
    %50 = arith.cmpi sle, %17, %49 : vector<16x128xi32>
    %c15_i32_21 = arith.constant 15 : i32
    %51 = tpu.dynamic_rotate %43 by %c15_i32_21 dim 0 : vector<16x128xf32>, i32 -> vector<16x128xf32>
    %cst_22 = arith.constant 0.000000e+00 : f32
    %52 = vector.broadcast %cst_22 : f32 to vector<16x128xf32>
    %53 = arith.select %50, %51, %52 : vector<16x128xi1>, vector<16x128xf32>
    %54 = arith.truncf %48 : vector<16x128xf32> to vector<16x128xbf16>
    %c0_23 = arith.constant 0 : index
    %c0_24 = arith.constant 0 : index
    %55 = vector.load %arg3[%c0_23, %c0_24] : memref<384x128xbf16, #tpu.memory_space<vmem>>, vector<128x128xbf16>
    %cst_25 = arith.constant dense<0.000000e+00> : vector<16x128xf32>
    %56 = tpu.matmul %54, %55, %cst_25 {dimension_numbers = #tpu.dot_dimension_numbers<[1], [0], [0], [1], [0, 0, 1, 1], [], []>} : vector<16x128xbf16>, vector<128x128xbf16>, vector<16x128xf32> -> vector<16x128xf32>
    %57 = arith.truncf %43 : vector<16x128xf32> to vector<16x128xbf16>
    %c128_26 = arith.constant 128 : index
    %c0_27 = arith.constant 0 : index
    %58 = vector.load %arg3[%c128_26, %c0_27] : memref<384x128xbf16, #tpu.memory_space<vmem>>, vector<128x128xbf16>
    %cst_28 = arith.constant dense<0.000000e+00> : vector<16x128xf32>
    %59 = tpu.matmul %57, %58, %cst_28 {dimension_numbers = #tpu.dot_dimension_numbers<[1], [0], [0], [1], [0, 0, 1, 1], [], []>} : vector<16x128xbf16>, vector<128x128xbf16>, vector<16x128xf32> -> vector<16x128xf32>
    %60 = arith.addf %56, %59 : vector<16x128xf32>
    %61 = arith.truncf %53 : vector<16x128xf32> to vector<16x128xbf16>
    %c256_29 = arith.constant 256 : index
    %c0_30 = arith.constant 0 : index
    %62 = vector.load %arg3[%c256_29, %c0_30] : memref<384x128xbf16, #tpu.memory_space<vmem>>, vector<128x128xbf16>
    %cst_31 = arith.constant dense<0.000000e+00> : vector<16x128xf32>
    %63 = tpu.matmul %61, %62, %cst_31 {dimension_numbers = #tpu.dot_dimension_numbers<[1], [0], [0], [1], [0, 0, 1, 1], [], []>} : vector<16x128xbf16>, vector<128x128xbf16>, vector<16x128xf32> -> vector<16x128xf32>
    %64 = arith.addf %60, %63 : vector<16x128xf32>
    %c1 = arith.constant 1 : index
    %c0_32 = arith.constant 0 : index
    %65 = vector.load %arg4[%c1, %c0_32] : memref<2x128xf32, #tpu.memory_space<vmem>>, vector<1x128xf32>
    %66 = vector.broadcast %65 : vector<1x128xf32> to vector<16x128xf32>
    %67 = arith.addf %64, %66 : vector<16x128xf32>
    %68 = arith.addf %67, %0 : vector<16x128xf32>
    %cst_33 = arith.constant 0.000000e+00 : f32
    %69 = vector.broadcast %cst_33 : f32 to vector<16x128xf32>
    %70 = arith.maximumf %68, %69 : vector<16x128xf32>
    %c0_34 = arith.constant 0 : index
    %c0_35 = arith.constant 0 : index
    %71 = vector.load %arg5[%c0_34, %c0_35] : memref<16x128xf32, #tpu.memory_space<vmem>>, vector<16x128xf32>
    tpu.vector_store %arg5[%c0_34, %c0_35], %70 {strides = array<i32>} : memref<16x128xf32, #tpu.memory_space<vmem>>, vector<16x128xf32>,
    return
  }
  func.func @transform_0(%arg0: i32) -> (i32, i32) {
    %c0_i32 = arith.constant 0 : i32
    %c0_i32_0 = arith.constant 0 : i32
    return %arg0, %c0_i32 : i32, i32
  }
  func.func @transform_1(%arg0: i32) -> (i32, i32) {
    %c0_i32 = arith.constant 0 : i32
    %c0_i32_0 = arith.constant 0 : i32
    %c0_i32_1 = arith.constant 0 : i32
    return %c0_i32, %c0_i32_0 : i32, i32
  }
  func.func @transform_2(%arg0: i32) -> (i32, i32) {
    %c0_i32 = arith.constant 0 : i32
    %c0_i32_0 = arith.constant 0 : i32
    %c0_i32_1 = arith.constant 0 : i32
    return %c0_i32, %c0_i32_0 : i32, i32
  }
  func.func @transform_3(%arg0: i32) -> (i32, i32) {
    %c0_i32 = arith.constant 0 : i32
    %c0_i32_0 = arith.constant 0 : i32
    %c0_i32_1 = arith.constant 0 : i32
    return %c0_i32, %c0_i32_0 : i32, i32
  }
  func.func @transform_4(%arg0: i32) -> (i32, i32) {
    %c0_i32 = arith.constant 0 : i32
    %c0_i32_0 = arith.constant 0 : i32
    return %arg0, %c0_i32 : i32, i32
  }
}

</mosaic_0001>

<llo_original>
// kernel: tile.23
$region0: #{tile.23}
  #allocation0 [shape = 's32[1]{0}', space=sflag, size = 0x4, scoped, tag = 'scoped memory for tile.23']
  %s0 = inlined_call_operand.vmem [shape: f32[8], index: 0, kind: input, shape index: {}]
  %s1 = inlined_call_operand.vmem [shape: f32[16,8], index: 1, kind: output, shape index: {}]
  // Predicated region
  $region2: #{tile.23} parent=0 // pred_check
    _
  $region3: #{tile.23} parent=0 // pred_check_branch
    %3 = sbr.rel (0) target = $region5
  $region4: #{tile.23} parent=0 // pred_region
    _
  $region5: #{tile.23} parent=0 // pred_fallthru
    _
  %v4 = vld [vmem:[%s0] ss:$0 sm:$0xff]
  %5 = vst [vmem:[%s1] sm:$0xff] %v4
  %s6 = scalar_lea.vmem %s1, 8
  %7 = vst [vmem:[%s6] sm:$0xff] %v4

// kernel: mul.21
$region0: #{mul.21}
  %s0 = inlined_call_operand.vmem [shape: f32[16,8], index: 0, kind: input, shape index: {}]
  %s1 = inlined_call_operand.vmem [shape: f32[128], index: 1, kind: output, shape index: {}]
  $region1: #{mul.21} parent=0
    #allocation0 [shape = 'u8[4096]{0}', space=vmem, size = 0x1000, scoped, tag = 'scoped mem for output reshape']
    %v2 = vld [vmem:[%s0] sm:$0x1]
    %vm3 = vcmask 64512
    %4 = vst.msk [vmem:[#allocation0] sm:$0x1] %vm3, %v2
    %s5 = scalar_lea.vmem %s0, 15
    %v6 = vld [vmem:[%s5] sm:$0x1]
    %7 = vrot.lane.b32.xlu0 %v6, 120
    %v8 = vpop.permute.xlu0 %7
    %vm9 = vcmask 1048512
    %10 = vst.msk [vmem:[#allocation0] sm:$0x1] %vm9, %v8
    %s11 = scalar_lea.vmem %s0, 14
    %v12 = vld [vmem:[%s11] sm:$0x1]
    %13 = vrot.lane.b32.xlu0 %v12, 112
    %v14 = vpop.permute.xlu0 %13
    %vm15 = vcmask 982912
    %16 = vst.msk [vmem:[#allocation0] sm:$0x1] %vm15, %v14
    %s17 = scalar_lea.vmem %s0, 13
    %v18 = vld [vmem:[%s17] sm:$0x1]
    %19 = vrot.lane.b32.xlu0 %v18, 104
    %v20 = vpop.permute.xlu0 %19
    %vm21 = vcmask 917312
    %22 = vst.msk [vmem:[#allocation0] sm:$0x1] %vm21, %v20
    %s23 = scalar_lea.vmem %s0, 12
    %v24 = vld [vmem:[%s23] sm:$0x1]
    %25 = vrot.lane.b32.xlu0 %v24, 96
    %v26 = vpop.permute.xlu0 %25
    %vm27 = vcmask 851712
    %28 = vst.msk [vmem:[#allocation0] sm:$0x1] %vm27, %v26
    %s29 = scalar_lea.vmem %s0, 11
    %v30 = vld [vmem:[%s29] sm:$0x1]
    %31 = vrot.lane.b32.xlu0 %v30, 88
    %v32 = vpop.permute.xlu0 %31
    %vm33 = vcmask 786112
    %34 = vst.msk [vmem:[#allocation0] sm:$0x1] %vm33, %v32
    %s35 = scalar_lea.vmem %s0, 10
    %v36 = vld [vmem:[%s35] sm:$0x1]
    %37 = vrot.lane.b32.xlu0 %v36, 80
    %v38 = vpop.permute.xlu0 %37
    %vm39 = vcmask 720512
    %40 = vst.msk [vmem:[#allocation0] sm:$0x1] %vm39, %v38
    %s41 = scalar_lea.vmem %s0, 9
    %v42 = vld [vmem:[%s41] sm:$0x1]
    %43 = vrot.lane.b32.xlu0 %v42, 72
    %v44 = vpop.permute.xlu0 %43
    %vm45 = vcmask 654912
    %46 = vst.msk [vmem:[#allocation0] sm:$0x1] %vm45, %v44
    %s47 = scalar_lea.vmem %s0, 8
    %v48 = vld [vmem:[%s47] sm:$0x1]
    %49 = vrot.lane.b32.xlu0 %v48, 64
    %v50 = vpop.permute.xlu0 %49
    %vm51 = vcmask 589312
    %52 = vst.msk [vmem:[#allocation0] sm:$0x1] %vm51, %v50
    %s53 = scalar_lea.vmem %s0, 7
    %v54 = vld [vmem:[%s53] sm:$0x1]
    %55 = vrot.lane.b32.xlu0 %v54, 56
    %v56 = vpop.permute.xlu0 %55
    %vm57 = vcmask 523712
    %58 = vst.msk [vmem:[#allocation0] sm:$0x1] %vm57, %v56
    %s59 = scalar_lea.vmem %s0, 6
    %v60 = vld [vmem:[%s59] sm:$0x1]
    %61 = vrot.lane.b32.xlu0 %v60, 48
    %v62 = vpop.permute.xlu0 %61
    %vm63 = vcmask 458112
    %64 = vst.msk [vmem:[#allocation0] sm:$0x1] %vm63, %v62
    %s65 = scalar_lea.vmem %s0, 5
    %v66 = vld [vmem:[%s65] sm:$0x1]
    %67 = vrot.lane.b32.xlu0 %v66, 40
    %v68 = vpop.permute.xlu0 %67
    %vm69 = vcmask 392512
    %70 = vst.msk [vmem:[#allocation0] sm:$0x1] %vm69, %v68
    %s71 = scalar_lea.vmem %s0, 4
    %v72 = vld [vmem:[%s71] sm:$0x1]
    %73 = vrot.lane.b32.xlu0 %v72, 32
    %v74 = vpop.permute.xlu0 %73
    %vm75 = vcmask 326912
    %76 = vst.msk [vmem:[#allocation0] sm:$0x1] %vm75, %v74
    %s77 = scalar_lea.vmem %s0, 3
    %v78 = vld [vmem:[%s77] sm:$0x1]
    %79 = vrot.lane.b32.xlu0 %v78, 24
    %v80 = vpop.permute.xlu0 %79
    %vm81 = vcmask 261312
    %82 = vst.msk [vmem:[#allocation0] sm:$0x1] %vm81, %v80
    %s83 = scalar_lea.vmem %s0, 2
    %v84 = vld [vmem:[%s83] sm:$0x1]
    %85 = vrot.lane.b32.xlu0 %v84, 16
    %v86 = vpop.permute.xlu0 %85
    %vm87 = vcmask 195712
    %88 = vst.msk [vmem:[#allocation0] sm:$0x1] %vm87, %v86
    %s89 = scalar_lea.vmem %s0, 1
    %v90 = vld [vmem:[%s89] sm:$0x1]
    %91 = vrot.lane.b32.xlu0 %v90, 8
    %v92 = vpop.permute.xlu0 %91
    %vm93 = vcmask 130112
    %94 = vst.msk [vmem:[#allocation0] sm:$0x1] %vm93, %v92
    %s96 = sshllo.u32 0, 1
    %v98 = vld [vmem:[#allocation0] sm:%s96]
    %s99 = sshllo.u32 0, 1
    %100 = vst [vmem:[%s1] sm:%s99] %v98

// kernel: tile.38
$region0: #{tile.38}
  %s0 = inlined_call_operand.vmem [shape: f32[16,8], index: 0, kind: input, shape index: {}]
  %s1 = inlined_call_operand.vmem [shape: f32[1,128], index: 1, kind: output, shape index: {}]
  $region1: #{tile.38} parent=0
    #allocation0 [shape = 'u8[4096]{0}', space=vmem, size = 0x1000, scoped, tag = 'scoped mem for output reshape']
    %v2 = vld [vmem:[%s0] sm:$0x1]
    %vm3 = vcmask 64512
    %4 = vst.msk [vmem:[#allocation0] sm:$0x1] %vm3, %v2
    %s5 = scalar_lea.vmem %s0, 15
    %v6 = vld [vmem:[%s5] sm:$0x1]
    %7 = vrot.lane.b32.xlu0 %v6, 120
    %v8 = vpop.permute.xlu0 %7
    %vm9 = vcmask 1048512
    %10 = vst.msk [vmem:[#allocation0] sm:$0x1] %vm9, %v8
    %s11 = scalar_lea.vmem %s0, 14
    %v12 = vld [vmem:[%s11] sm:$0x1]
    %13 = vrot.lane.b32.xlu0 %v12, 112
    %v14 = vpop.permute.xlu0 %13
    %vm15 = vcmask 982912
    %16 = vst.msk [vmem:[#allocation0] sm:$0x1] %vm15, %v14
    %s17 = scalar_lea.vmem %s0, 13
    %v18 = vld [vmem:[%s17] sm:$0x1]
    %19 = vrot.lane.b32.xlu0 %v18, 104
    %v20 = vpop.permute.xlu0 %19
    %vm21 = vcmask 917312
    %22 = vst.msk [vmem:[#allocation0] sm:$0x1] %vm21, %v20
    %s23 = scalar_lea.vmem %s0, 12
    %v24 = vld [vmem:[%s23] sm:$0x1]
    %25 = vrot.lane.b32.xlu0 %v24, 96
    %v26 = vpop.permute.xlu0 %25
    %vm27 = vcmask 851712
    %28 = vst.msk [vmem:[#allocation0] sm:$0x1] %vm27, %v26
    %s29 = scalar_lea.vmem %s0, 11
    %v30 = vld [vmem:[%s29] sm:$0x1]
    %31 = vrot.lane.b32.xlu0 %v30, 88
    %v32 = vpop.permute.xlu0 %31
    %vm33 = vcmask 786112
    %34 = vst.msk [vmem:[#allocation0] sm:$0x1] %vm33, %v32
    %s35 = scalar_lea.vmem %s0, 10
    %v36 = vld [vmem:[%s35] sm:$0x1]
    %37 = vrot.lane.b32.xlu0 %v36, 80
    %v38 = vpop.permute.xlu0 %37
    %vm39 = vcmask 720512
    %40 = vst.msk [vmem:[#allocation0] sm:$0x1] %vm39, %v38
    %s41 = scalar_lea.vmem %s0, 9
    %v42 = vld [vmem:[%s41] sm:$0x1]
    %43 = vrot.lane.b32.xlu0 %v42, 72
    %v44 = vpop.permute.xlu0 %43
    %vm45 = vcmask 654912
    %46 = vst.msk [vmem:[#allocation0] sm:$0x1] %vm45, %v44
    %s47 = scalar_lea.vmem %s0, 8
    %v48 = vld [vmem:[%s47] sm:$0x1]
    %49 = vrot.lane.b32.xlu0 %v48, 64
    %v50 = vpop.permute.xlu0 %49
    %vm51 = vcmask 589312
    %52 = vst.msk [vmem:[#allocation0] sm:$0x1] %vm51, %v50
    %s53 = scalar_lea.vmem %s0, 7
    %v54 = vld [vmem:[%s53] sm:$0x1]
    %55 = vrot.lane.b32.xlu0 %v54, 56
    %v56 = vpop.permute.xlu0 %55
    %vm57 = vcmask 523712
    %58 = vst.msk [vmem:[#allocation0] sm:$0x1] %vm57, %v56
    %s59 = scalar_lea.vmem %s0, 6
    %v60 = vld [vmem:[%s59] sm:$0x1]
    %61 = vrot.lane.b32.xlu0 %v60, 48
    %v62 = vpop.permute.xlu0 %61
    %vm63 = vcmask 458112
    %64 = vst.msk [vmem:[#allocation0] sm:$0x1] %vm63, %v62
    %s65 = scalar_lea.vmem %s0, 5
    %v66 = vld [vmem:[%s65] sm:$0x1]
    %67 = vrot.lane.b32.xlu0 %v66, 40
    %v68 = vpop.permute.xlu0 %67
    %vm69 = vcmask 392512
    %70 = vst.msk [vmem:[#allocation0] sm:$0x1] %vm69, %v68
    %s71 = scalar_lea.vmem %s0, 4
    %v72 = vld [vmem:[%s71] sm:$0x1]
    %73 = vrot.lane.b32.xlu0 %v72, 32
    %v74 = vpop.permute.xlu0 %73
    %vm75 = vcmask 326912
    %76 = vst.msk [vmem:[#allocation0] sm:$0x1] %vm75, %v74
    %s77 = scalar_lea.vmem %s0, 3
    %v78 = vld [vmem:[%s77] sm:$0x1]
    %79 = vrot.lane.b32.xlu0 %v78, 24
    %v80 = vpop.permute.xlu0 %79
    %vm81 = vcmask 261312
    %82 = vst.msk [vmem:[#allocation0] sm:$0x1] %vm81, %v80
    %s83 = scalar_lea.vmem %s0, 2
    %v84 = vld [vmem:[%s83] sm:$0x1]
    %85 = vrot.lane.b32.xlu0 %v84, 16
    %v86 = vpop.permute.xlu0 %85
    %vm87 = vcmask 195712
    %88 = vst.msk [vmem:[#allocation0] sm:$0x1] %vm87, %v86
    %s89 = scalar_lea.vmem %s0, 1
    %v90 = vld [vmem:[%s89] sm:$0x1]
    %91 = vrot.lane.b32.xlu0 %v90, 8
    %v92 = vpop.permute.xlu0 %91
    %vm93 = vcmask 130112
    %94 = vst.msk [vmem:[#allocation0] sm:$0x1] %vm93, %v92
    %s96 = sshllo.u32 0, 1
    %v98 = vld [vmem:[#allocation0] sm:%s96]
    %s99 = sshllo.u32 0, 1
    %100 = vst [vmem:[%s1] sm:%s99] %v98

// kernel: basic_block_nhwc.1
$region0: #{basic_block_nhwc.1}
  #allocation0 [shape = 'u32[]', space=smem, size = 0x4, offset = 0x4, fixed_abs, tag = 'smem constant byte address 0x4 - core index']
  #allocation1 [shape = 'u32[144,128]{1,0:T(1,128)}', space=vmem, size = 0x12000, scoped, tag = 'internal scratch']
  %s0 = inlined_call_operand.vmem [shape: f32[32,128], index: 0, kind: input, shape index: {}]
  %s1 = inlined_call_operand.vmem [shape: bf16[384,128], index: 1, kind: input, shape index: {}]
  %s2 = inlined_call_operand.vmem [shape: bf16[384,128], index: 2, kind: input, shape index: {}]
  %s3 = inlined_call_operand.vmem [shape: f32[2,128], index: 3, kind: input, shape index: {}]
  %s4 = inlined_call_operand.vmem [shape: f32[32,128], index: 4, kind: output, shape index: {}]
  %s5 = sld [smem:[#allocation0]]
  $region49: #{basic_block_nhwc.1} parent=0
    _
  %s7 = ssub.s32 1, %s5
  %s8 = scalar_select 0, %s7, %s5
  loop: start=0, step=1, limit=4
  $region2: #{basic_block_nhwc.1} parent=0 // loop_pre_header
    _
  $region3: #{basic_block_nhwc.1} parent=0 // loop_header
    %s10 = sphi 0, %s14
    %p11 = scmp.ge.s32.totalorder %s10, 4
    %s20 = sphi 0, %s22
    %s23 = sphi 0, %s20
    %s24 = sphi 0, %s23
    %s40 = sphi 0, %s24
    %s44 = sphi 0, %s44
    %s46 = sphi 0, %s44
    %s47 = sphi 0, %s46
    %s61 = sphi 0, %s47
    %s65 = sphi 0, %s65
    %s67 = sphi 0, %s65
    %s68 = sphi 0, %s67
    %s82 = sphi 0, %s68
    %s86 = sphi 0, %s86
    %s88 = sphi 0, %s86
    %s89 = sphi 0, %s88
    %s103 = sphi 0, %s89
    %s109 = sphi 0, %s111
    %s112 = sphi 0, %s109
    %s113 = sphi 0, %s112
    %s129 = sphi 0, %s113
  $region4: #{basic_block_nhwc.1} parent=0 // loop_header_branch
    %13 = sbr.rel (%p11) target = $region8
  $region5: #{basic_block_nhwc.1} parent=0 // loop_body
    %s15 = ssub.s32 %s10, 1
    %s16 = ssub.s32 %s10, 2
    %s17 = sadd.s32 %s10, 1
    %s18 = ssub.s32 %s10, %s17
    %p19 = scmp.eq.s32.totalorder %s18, 0
    %s21 = sadd.s32 %s20, 1
    %s22 = scalar_select %p19, %s20, %s21
    %p25 = pneg %p19
    %p26 = scmp.eq.s32.totalorder %s10, 1
    %p27 = por %p25, %p26
    %p28 = scmp.ne.s32.totalorder %s20, %s23
    %p29 = scmp.eq.s32.totalorder %s10, 0
    %p30 = por %p28, %p29
    %p31 = scmp.ne.s32.totalorder %s20, %s23
    %p32 = scmp.eq.s32.totalorder %s15, 1
    %p33 = por %p31, %p32
    %p34 = scmp.ne.s32.totalorder %s23, %s24
    %p35 = scmp.eq.s32.totalorder %s15, 0
    %p36 = por %p34, %p35
    %p37 = scmp.ne.s32.totalorder %s23, %s24
    %p38 = scmp.eq.s32.totalorder %s16, 1
    %p39 = por %p37, %p38
    %p41 = scmp.ne.s32.totalorder %s24, %s40
    %p42 = scmp.eq.s32.totalorder %s16, 0
    %p43 = por %p41, %p42
    %s45 = sadd.s32 %s44, 1
    %p48 = scmp.eq.s32.totalorder %s10, 1
    %p49 = scmp.ne.s32.totalorder %s44, %s46
    %p50 = scmp.eq.s32.totalorder %s10, 0
    %p51 = por %p49, %p50
    %p52 = scmp.ne.s32.totalorder %s44, %s46
    %p53 = scmp.eq.s32.totalorder %s15, 1
    %p54 = por %p52, %p53
    %p55 = scmp.ne.s32.totalorder %s46, %s47
    %p56 = scmp.eq.s32.totalorder %s15, 0
    %p57 = por %p55, %p56
    %p58 = scmp.ne.s32.totalorder %s46, %s47
    %p59 = scmp.eq.s32.totalorder %s16, 1
    %p60 = por %p58, %p59
    %p62 = scmp.ne.s32.totalorder %s47, %s61
    %p63 = scmp.eq.s32.totalorder %s16, 0
    %p64 = por %p62, %p63
    %s66 = sadd.s32 %s65, 1
    %p69 = scmp.eq.s32.totalorder %s10, 1
    %p70 = scmp.ne.s32.totalorder %s65, %s67
    %p71 = scmp.eq.s32.totalorder %s10, 0
    %p72 = por %p70, %p71
    %p73 = scmp.ne.s32.totalorder %s65, %s67
    %p74 = scmp.eq.s32.totalorder %s15, 1
    %p75 = por %p73, %p74
    %p76 = scmp.ne.s32.totalorder %s67, %s68
    %p77 = scmp.eq.s32.totalorder %s15, 0
    %p78 = por %p76, %p77
    %p79 = scmp.ne.s32.totalorder %s67, %s68
    %p80 = scmp.eq.s32.totalorder %s16, 1
    %p81 = por %p79, %p80
    %p83 = scmp.ne.s32.totalorder %s68, %s82
    %p84 = scmp.eq.s32.totalorder %s16, 0
    %p85 = por %p83, %p84
    %s87 = sadd.s32 %s86, 1
    %p90 = scmp.eq.s32.totalorder %s10, 1
    %p91 = scmp.ne.s32.totalorder %s86, %s88
    %p92 = scmp.eq.s32.totalorder %s10, 0
    %p93 = por %p91, %p92
    %p94 = scmp.ne.s32.totalorder %s86, %s88
    %p95 = scmp.eq.s32.totalorder %s15, 1
    %p96 = por %p94, %p95
    %p97 = scmp.ne.s32.totalorder %s88, %s89
    %p98 = scmp.eq.s32.totalorder %s15, 0
    %p99 = por %p97, %p98
    %p100 = scmp.ne.s32.totalorder %s88, %s89
    %p101 = scmp.eq.s32.totalorder %s16, 1
    %p102 = por %p100, %p101
    %p104 = scmp.ne.s32.totalorder %s89, %s103
    %p105 = scmp.eq.s32.totalorder %s16, 0
    %p106 = por %p104, %p105
    %s107 = ssub.s32 %s10, %s17
    %p108 = scmp.eq.s32.totalorder %s107, 0
    %s110 = sadd.s32 %s109, 1
    %s111 = scalar_select %p108, %s109, %s110
    %p114 = pneg %p108
    %p115 = scmp.eq.s32.totalorder %s10, 1
    %p116 = por %p114, %p115
    %p117 = scmp.ne.s32.totalorder %s109, %s112
    %p118 = scmp.eq.s32.totalorder %s10, 0
    %p119 = por %p117, %p118
    %p120 = scmp.ne.s32.totalorder %s109, %s112
    %p121 = scmp.eq.s32.totalorder %s15, 1
    %p122 = por %p120, %p121
    %p123 = scmp.ne.s32.totalorder %s112, %s113
    %p124 = scmp.eq.s32.totalorder %s15, 0
    %p125 = por %p123, %p124
    %p126 = scmp.ne.s32.totalorder %s112, %s113
    %p127 = scmp.eq.s32.totalorder %s16, 1
    %p128 = por %p126, %p127
    %p130 = scmp.ne.s32.totalorder %s113, %s129
    %p131 = scmp.eq.s32.totalorder %s16, 0
    %p132 = por %p130, %p131
    %p133 = scmp.le.s32.totalorder 1, %s10
    %p134 = scmp.lt.s32.totalorder %s10, 3
    %p135 = pnand %p133, %p134
    %p136 = pneg %p135
    // Predicated region
    $region9: #{basic_block_nhwc.1} parent=5 // pred_check
      _
    $region10: #{basic_block_nhwc.1} parent=5 // pred_check_branch
      %138 = sbr.rel (%p135) target = $region12
    $region11: #{basic_block_nhwc.1} parent=5 // pred_region
      %s139 = ssub.s32 %s10, 1
      // Predicated region
      $region13: #{basic_block_nhwc.1} parent=11 // pred_check
        %p140 = pneg %p57
      $region14: #{basic_block_nhwc.1} parent=11 // pred_check_branch
        %142 = sbr.rel (%p140) target = $region16
      $region15: #{basic_block_nhwc.1} parent=11 // pred_region
        _
      $region16: #{basic_block_nhwc.1} parent=11 // pred_fallthru
        _
      // Predicated region
      $region17: #{basic_block_nhwc.1} parent=11 // pred_check
        %p143 = pneg %p78
      $region18: #{basic_block_nhwc.1} parent=11 // pred_check_branch
        %145 = sbr.rel (%p143) target = $region20
      $region19: #{basic_block_nhwc.1} parent=11 // pred_region
        _
      $region20: #{basic_block_nhwc.1} parent=11 // pred_fallthru
        _
      // Predicated region
      $region21: #{basic_block_nhwc.1} parent=11 // pred_check
        %p146 = pneg %p99
      $region22: #{basic_block_nhwc.1} parent=11 // pred_check_branch
        %148 = sbr.rel (%p146) target = $region24
      $region23: #{basic_block_nhwc.1} parent=11 // pred_region
        _
      $region24: #{basic_block_nhwc.1} parent=11 // pred_fallthru
        _
    $region12: #{basic_block_nhwc.1} parent=5 // pred_fallthru
      _
    %p149 = scmp.lt.s32.totalorder %s10, 2
    // Predicated region
    $region25: #{basic_block_nhwc.1} parent=5 // pred_check
      %p150 = pneg %p149
    $region26: #{basic_block_nhwc.1} parent=5 // pred_check_branch
      %152 = sbr.rel (%p150) target = $region28
    $region27: #{basic_block_nhwc.1} parent=5 // pred_region
      // Predicated region
      $region29: #{basic_block_nhwc.1} parent=27 // pred_check
        %p153 = pneg %p30
      $region30: #{basic_block_nhwc.1} parent=27 // pred_check_branch
        %155 = sbr.rel (%p153) target = $region32
      $region31: #{basic_block_nhwc.1} parent=27 // pred_region
        %s156 = smul.u32 2, %s10
        %p157 = scmp.lt.s32.totalorder %s156, 3
        %s158 = scalar_select %p157, %s156, 3
        %s159 = smul.addr %s158, 8
        %s160 = scalar_lea.vmem %s0, %s159
        %s161 = smul.u32 2, %s10
      $region32: #{basic_block_nhwc.1} parent=27 // pred_fallthru
        _
    $region28: #{basic_block_nhwc.1} parent=5 // pred_fallthru
      _
    %p162 = scmp.le.s32.totalorder 1, %s10
    %p163 = scmp.lt.s32.totalorder %s10, 3
    %p164 = pnand %p162, %p163
    %p165 = pneg %p164
    // Predicated region
    $region33: #{basic_block_nhwc.1} parent=5 // pred_check
      _
    $region34: #{basic_block_nhwc.1} parent=5 // pred_check_branch
      %167 = sbr.rel (%p164) target = $region36
    $region35: #{basic_block_nhwc.1} parent=5 // pred_region
      %s168 = ssub.s32 %s10, 1
      %s169 = smul.u32 2, %s15
      %p170 = scmp.lt.s32.totalorder %s169, 3
      %s171 = scalar_select %p170, %s169, 3
      %s172 = smul.addr %s171, 8
      %s173 = scalar_lea.vmem %s0, %s172
      %p174 = pneg %p36
      %p175 = pneg %p33
      %p176 = pneg %p57
      %p177 = pneg %p54
      %p178 = pneg %p78
      %p179 = pneg %p75
      %p180 = pneg %p99
      %p181 = pneg %p96
      %p182 = pneg %p125
      %p183 = pneg %p122
      %s184 = smul.u32 2, %s15
      %p185 = scmp.lt.s32.totalorder %s184, 3
      %s186 = scalar_select %p185, %s184, 3
      %s187 = smul.addr %s186, 8
      %s188 = scalar_lea.vmem %s4, %s187
      %s189 = smul.u32 2, %s15
      %p190 = scmp.lt.s32.totalorder %s189, 3
      %s191 = scalar_select %p190, %s189, 3
      %s192 = smul.addr %s191, 8
      %s193 = scalar_lea.vmem %s0, %s192
      %s194 = smul.u32 2, %s15
      %s195 = smul.u32 2, %s15
      %p196 = scmp.lt.s32.totalorder %s195, 3
      %s197 = scalar_select %p196, %s195, 3
      %s198 = smul.addr %s197, 8
      %s199 = scalar_lea.vmem %s4, %s198
      %s200 = smul.u32 2, %s15
      %v202 = vld [vmem:[%s193] sm:$0xff]
      %v203 = vld [vmem:[%s193 + $0x8] sm:$0xff]
      %v204 = vlaneseq
      %v205 = vshrl.u32 %v204, 7
      %v206 = vadd.s32 %v205, 8
      %vm207 = vcmp.lt.s32.totalorder %v205, 0
      %v208 = vsub.s32 0, %v205
      %v209 = vsel %vm207, %v208, %v205
      %v210 = vshrl.u32 %v209, 4
      %v211 = vand.u32 %v209, 15
      %v212 = vsub.s32 0, %v211
      %v213 = vsel %vm207, %v212, %v211
      %vm214 = vcmp.lt.s32.totalorder %v206, 0
      %v215 = vsub.s32 0, %v206
      %v216 = vsel %vm214, %v215, %v206
      %v217 = vshrl.u32 %v216, 4
      %v218 = vand.u32 %v216, 15
      %v219 = vsub.s32 0, %v218
      %v220 = vsel %vm214, %v219, %v218
      %vm221 = vcmp.ne.s32.totalorder %v213, 0
      %vm222 = vcmp.ne.s32.totalorder %v220, 0
      %vm223 = vcmp.lt.s32.totalorder %v213, 0
      %vm224 = vcmp.lt.s32.totalorder %v220, 0
      %vm225 = vmand %vm223, %vm221
      %vm226 = vmand %vm224, %vm222
      %v227 = vadd.s32 %v213, 16
      %v228 = vadd.s32 %v220, 16
      %v229 = vsel %vm225, %v227, %v213
      %v230 = vsel %vm226, %v228, %v220
      %vm231 = vcmp.ge.s32.totalorder %v229, 1
      %vm232 = vcmp.ge.s32.totalorder %v230, 1
      %v233 = vrot.slane %v202, 7
      %v234 = vrot.slane %v203, 7
      %vm235 = vcmp.lt.s32.totalorder %v205, 1
      %v236 = vsel %vm235, %v233, %v234
      %v237 = vsel %vm235, %v234, %v233
      %v238 = vsel %vm231, %v237, 0.0
      %v239 = vsel %vm232, %v236, 0.0
      %vm240 = vcmp.le.s32.totalorder %v229, 14
      %vm241 = vcmp.le.s32.totalorder %v230, 14
      %v242 = vrot.slane %v202, 1
      %v243 = vrot.slane %v203, 1
      %vm244 = vcmp.lt.s32.totalorder %v205, 7
      %v245 = vsel %vm244, %v242, %v243
      %v246 = vsel %vm244, %v243, %v242
      %v247 = vsel %vm240, %v245, 0.0
      %v248 = vsel %vm241, %v246, 0.0
      %v249 = vpack.c.bf16 %v239, %v238
      %v250 = vld [vmem:[%s1] sm:$0xf]
      %v251 = vld [vmem:[%s1 + $0x4] sm:$0xf]
      %v252 = vld [vmem:[%s1 + $0x8] sm:$0xf]
      %v253 = vld [vmem:[%s1 + $0xc] sm:$0xf]
      %v254 = vld [vmem:[%s1 + $0x10] sm:$0xf]
      %v255 = vld [vmem:[%s1 + $0x14] sm:$0xf]
      %v256 = vld [vmem:[%s1 + $0x18] sm:$0xf]
      %v257 = vld [vmem:[%s1 + $0x1c] sm:$0xf]
      %v258 = vld [vmem:[%s1 + $0x20] sm:$0xf]
      %v259 = vld [vmem:[%s1 + $0x24] sm:$0xf]
      %v260 = vld [vmem:[%s1 + $0x28] sm:$0xf]
      %v261 = vld [vmem:[%s1 + $0x2c] sm:$0xf]
      %v262 = vld [vmem:[%s1 + $0x30] sm:$0xf]
      %v263 = vld [vmem:[%s1 + $0x34] sm:$0xf]
      %v264 = vld [vmem:[%s1 + $0x38] sm:$0xf]
      %v265 = vld [vmem:[%s1 + $0x3c] sm:$0xf]
      %v266 = vpack.c.bf16 %v203, %v202
      %v267 = vld [vmem:[%s1 + $0x40] sm:$0xf]
      %v268 = vld [vmem:[%s1 + $0x44] sm:$0xf]
      %v269 = vld [vmem:[%s1 + $0x48] sm:$0xf]
      %v270 = vld [vmem:[%s1 + $0x4c] sm:$0xf]
      %v271 = vld [vmem:[%s1 + $0x50] sm:$0xf]
      %v272 = vld [vmem:[%s1 + $0x54] sm:$0xf]
      %v273 = vld [vmem:[%s1 + $0x58] sm:$0xf]
      %v274 = vld [vmem:[%s1 + $0x5c] sm:$0xf]
      %v275 = vld [vmem:[%s1 + $0x60] sm:$0xf]
      %v276 = vld [vmem:[%s1 + $0x64] sm:$0xf]
      %v277 = vld [vmem:[%s1 + $0x68] sm:$0xf]
      %v278 = vld [vmem:[%s1 + $0x6c] sm:$0xf]
      %v279 = vld [vmem:[%s1 + $0x70] sm:$0xf]
      %v280 = vld [vmem:[%s1 + $0x74] sm:$0xf]
      %v281 = vld [vmem:[%s1 + $0x78] sm:$0xf]
      %v282 = vld [vmem:[%s1 + $0x7c] sm:$0xf]
      %v299 = vunpack.c.l.b16 %v267
      %v300 = vunpack.c.l.b16 %v268
      %v301 = vunpack.c.l.b16 %v269
      %v302 = vunpack.c.l.b16 %v270
      %v303 = vunpack.c.l.b16 %v271
      %v304 = vunpack.c.l.b16 %v272
      %v305 = vunpack.c.l.b16 %v273
      %v306 = vunpack.c.l.b16 %v274
      %v307 = vunpack.c.l.b16 %v275
      %v308 = vunpack.c.l.b16 %v276
      %v309 = vunpack.c.l.b16 %v277
      %v310 = vunpack.c.l.b16 %v278
      %v311 = vunpack.c.l.b16 %v279
      %v312 = vunpack.c.l.b16 %v280
      %v313 = vunpack.c.l.b16 %v281
      %v314 = vunpack.c.l.b16 %v282
      %v315 = vpack.c.b16 %v300, %v299
      %v316 = vpack.c.b16 %v302, %v301
      %v317 = vpack.c.b16 %v304, %v303
      %v318 = vpack.c.b16 %v306, %v305
      %v319 = vpack.c.b16 %v308, %v307
      %v320 = vpack.c.b16 %v310, %v309
      %v321 = vpack.c.b16 %v312, %v311
      %v322 = vpack.c.b16 %v314, %v313
      %331 = vmatprep.subr.bf16.mxu0 0
      %332 = vmatpush1.bf16.msra.mxu0 %v315
      %333 = vmatprep.subr.bf16.mxu0 0
      %334 = vmatpush1.bf16.msra.mxu0 %v316
      %335 = vmatprep.subr.bf16.mxu0 0
      %336 = vmatpush1.bf16.msra.mxu0 %v317
      %337 = vmatprep.subr.bf16.mxu0 0
      %338 = vmatpush1.bf16.msra.mxu0 %v318
      %339 = vmatprep.subr.bf16.mxu0 0
      %340 = vmatpush1.bf16.msra.mxu0 %v319
      %341 = vmatprep.subr.bf16.mxu0 0
      %342 = vmatpush1.bf16.msra.mxu0 %v320
      %343 = vmatprep.subr.bf16.mxu0 0
      %344 = vmatpush1.bf16.msra.mxu0 %v321
      %345 = vmatprep.subr.bf16.mxu0 0
      %346 = vmatpush1.bf16.msra.mxu0 %v322
      %347 = vmatprep.subr.bf16.mxu0 0
      %348 = vmatpush1.bf16.msra.mxu0 0
      %349 = vmatprep.subr.bf16.mxu0 0
      %350 = vmatpush1.bf16.msra.mxu0 0
      %351 = vmatprep.subr.bf16.mxu0 0
      %352 = vmatpush1.bf16.msra.mxu0 0
      %353 = vmatprep.subr.bf16.mxu0 0
      %354 = vmatpush1.bf16.msra.mxu0 0
      %355 = vmatprep.subr.bf16.mxu0 0
      %356 = vmatpush1.bf16.msra.mxu0 0
      %357 = vmatprep.subr.bf16.mxu0 0
      %358 = vmatpush1.bf16.msra.mxu0 0
      %359 = vmatprep.subr.bf16.mxu0 0
      %360 = vmatpush1.bf16.msra.mxu0 0
      %361 = vmatprep.subr.bf16.mxu0 0
      %362 = vmatpush1.bf16.msra.mxu0 0
      %363 = vmatprep.mubr.bf16.mxu0 0
      %364 = vmatmul.mubr.bf16.gmra.mrb[0].mxu0 %v266
      %v365 = vpop.f32.mrb[0].mxu0
      %v366 = vadd.f32 0.0, %v365
      %v367 = vpop.f32.mrb[0].mxu0
      %v368 = vpop.f32.mrb[0].mxu0
      %v369 = vadd.f32 0.0, %v368
      %v370 = vpop.f32.mrb[0].mxu0
      %371 = vdwg.mxu0
      %v388 = vunpack.c.l.b16 %v250
      %v389 = vunpack.c.l.b16 %v251
      %v390 = vunpack.c.l.b16 %v252
      %v391 = vunpack.c.l.b16 %v253
      %v392 = vunpack.c.l.b16 %v254
      %v393 = vunpack.c.l.b16 %v255
      %v394 = vunpack.c.l.b16 %v256
      %v395 = vunpack.c.l.b16 %v257
      %v396 = vunpack.c.l.b16 %v258
      %v397 = vunpack.c.l.b16 %v259
      %v398 = vunpack.c.l.b16 %v260
      %v399 = vunpack.c.l.b16 %v261
      %v400 = vunpack.c.l.b16 %v262
      %v401 = vunpack.c.l.b16 %v263
      %v402 = vunpack.c.l.b16 %v264
      %v403 = vunpack.c.l.b16 %v265
      %v404 = vpack.c.b16 %v389, %v388
      %v405 = vpack.c.b16 %v391, %v390
      %v406 = vpack.c.b16 %v393, %v392
      %v407 = vpack.c.b16 %v395, %v394
      %v408 = vpack.c.b16 %v397, %v396
      %v409 = vpack.c.b16 %v399, %v398
      %v410 = vpack.c.b16 %v401, %v400
      %v411 = vpack.c.b16 %v403, %v402
      %420 = vmatprep.subr.bf16.mxu0 0
      %421 = vmatpush1.bf16.msra.mxu0 %v404
      %422 = vmatprep.subr.bf16.mxu0 0
      %423 = vmatpush1.bf16.msra.mxu0 %v405
      %424 = vmatprep.subr.bf16.mxu0 0
      %425 = vmatpush1.bf16.msra.mxu0 %v406
      %426 = vmatprep.subr.bf16.mxu0 0
      %427 = vmatpush1.bf16.msra.mxu0 %v407
      %428 = vmatprep.subr.bf16.mxu0 0
      %429 = vmatpush1.bf16.msra.mxu0 %v408
      %430 = vmatprep.subr.bf16.mxu0 0
      %431 = vmatpush1.bf16.msra.mxu0 %v409
      %432 = vmatprep.subr.bf16.mxu0 0
      %433 = vmatpush1.bf16.msra.mxu0 %v410
      %434 = vmatprep.subr.bf16.mxu0 0
      %435 = vmatpush1.bf16.msra.mxu0 %v411
      %436 = vmatprep.subr.bf16.mxu0 0
      %437 = vmatpush1.bf16.msra.mxu0 0
      %438 = vmatprep.subr.bf16.mxu0 0
      %439 = vmatpush1.bf16.msra.mxu0 0
      %440 = vmatprep.subr.bf16.mxu0 0
      %441 = vmatpush1.bf16.msra.mxu0 0
      %442 = vmatprep.subr.bf16.mxu0 0
      %443 = vmatpush1.bf16.msra.mxu0 0
      %444 = vmatprep.subr.bf16.mxu0 0
      %445 = vmatpush1.bf16.msra.mxu0 0
      %446 = vmatprep.subr.bf16.mxu0 0
      %447 = vmatpush1.bf16.msra.mxu0 0
      %448 = vmatprep.subr.bf16.mxu0 0
      %449 = vmatpush1.bf16.msra.mxu0 0
      %450 = vmatprep.subr.bf16.mxu0 0
      %451 = vmatpush1.bf16.msra.mxu0 0
      %452 = vmatprep.mubr.bf16.mxu0 0
      %453 = vmatmul.mubr.bf16.gmra.mrb[0].mxu0 %v249
      %v454 = vpop.f32.mrb[0].mxu0
      %v455 = vadd.f32 %v366, %v454
      %v456 = vpop.f32.mrb[0].mxu0
      %v457 = vpop.f32.mrb[0].mxu0
      %v458 = vadd.f32 %v369, %v457
      %v459 = vpop.f32.mrb[0].mxu0
      %460 = vdwg.mxu0
      %v461 = vpack.c.bf16 %v248, %v247
      %v462 = vld [vmem:[%s1 + $0x80] sm:$0xf]
      %v463 = vld [vmem:[%s1 + $0x84] sm:$0xf]
      %v464 = vld [vmem:[%s1 + $0x88] sm:$0xf]
      %v465 = vld [vmem:[%s1 + $0x8c] sm:$0xf]
      %v466 = vld [vmem:[%s1 + $0x90] sm:$0xf]
      %v467 = vld [vmem:[%s1 + $0x94] sm:$0xf]
      %v468 = vld [vmem:[%s1 + $0x98] sm:$0xf]
      %v469 = vld [vmem:[%s1 + $0x9c] sm:$0xf]
      %v470 = vld [vmem:[%s1 + $0xa0] sm:$0xf]
      %v471 = vld [vmem:[%s1 + $0xa4] sm:$0xf]
      %v472 = vld [vmem:[%s1 + $0xa8] sm:$0xf]
      %v473 = vld [vmem:[%s1 + $0xac] sm:$0xf]
      %v474 = vld [vmem:[%s1 + $0xb0] sm:$0xf]
      %v475 = vld [vmem:[%s1 + $0xb4] sm:$0xf]
      %v476 = vld [vmem:[%s1 + $0xb8] sm:$0xf]
      %v477 = vld [vmem:[%s1 + $0xbc] sm:$0xf]
      %v494 = vunpack.c.l.b16 %v462
      %v495 = vunpack.c.l.b16 %v463
      %v496 = vunpack.c.l.b16 %v464
      %v497 = vunpack.c.l.b16 %v465
      %v498 = vunpack.c.l.b16 %v466
      %v499 = vunpack.c.l.b16 %v467
      %v500 = vunpack.c.l.b16 %v468
      %v501 = vunpack.c.l.b16 %v469
      %v502 = vunpack.c.l.b16 %v470
      %v503 = vunpack.c.l.b16 %v471
      %v504 = vunpack.c.l.b16 %v472
      %v505 = vunpack.c.l.b16 %v473
      %v506 = vunpack.c.l.b16 %v474
      %v507 = vunpack.c.l.b16 %v475
      %v508 = vunpack.c.l.b16 %v476
      %v509 = vunpack.c.l.b16 %v477
      %v510 = vpack.c.b16 %v495, %v494
      %v511 = vpack.c.b16 %v497, %v496
      %v512 = vpack.c.b16 %v499, %v498
      %v513 = vpack.c.b16 %v501, %v500
      %v514 = vpack.c.b16 %v503, %v502
      %v515 = vpack.c.b16 %v505, %v504
      %v516 = vpack.c.b16 %v507, %v506
      %v517 = vpack.c.b16 %v509, %v508
      %526 = vmatprep.subr.bf16.mxu0 0
      %527 = vmatpush1.bf16.msra.mxu0 %v510
      %528 = vmatprep.subr.bf16.mxu0 0
      %529 = vmatpush1.bf16.msra.mxu0 %v511
      %530 = vmatprep.subr.bf16.mxu0 0
      %531 = vmatpush1.bf16.msra.mxu0 %v512
      %532 = vmatprep.subr.bf16.mxu0 0
      %533 = vmatpush1.bf16.msra.mxu0 %v513
      %534 = vmatprep.subr.bf16.mxu0 0
      %535 = vmatpush1.bf16.msra.mxu0 %v514
      %536 = vmatprep.subr.bf16.mxu0 0
      %537 = vmatpush1.bf16.msra.mxu0 %v515
      %538 = vmatprep.subr.bf16.mxu0 0
      %539 = vmatpush1.bf16.msra.mxu0 %v516
      %540 = vmatprep.subr.bf16.mxu0 0
      %541 = vmatpush1.bf16.msra.mxu0 %v517
      %542 = vmatprep.subr.bf16.mxu0 0
      %543 = vmatpush1.bf16.msra.mxu0 0
      %544 = vmatprep.subr.bf16.mxu0 0
      %545 = vmatpush1.bf16.msra.mxu0 0
      %546 = vmatprep.subr.bf16.mxu0 0
      %547 = vmatpush1.bf16.msra.mxu0 0
      %548 = vmatprep.subr.bf16.mxu0 0
      %549 = vmatpush1.bf16.msra.mxu0 0
      %550 = vmatprep.subr.bf16.mxu0 0
      %551 = vmatpush1.bf16.msra.mxu0 0
      %552 = vmatprep.subr.bf16.mxu0 0
      %553 = vmatpush1.bf16.msra.mxu0 0
      %554 = vmatprep.subr.bf16.mxu0 0
      %555 = vmatpush1.bf16.msra.mxu0 0
      %556 = vmatprep.subr.bf16.mxu0 0
      %557 = vmatpush1.bf16.msra.mxu0 0
      %558 = vmatprep.mubr.bf16.mxu0 0
      %559 = vmatmul.mubr.bf16.gmra.mrb[0].mxu0 %v461
      %v560 = vpop.f32.mrb[0].mxu0
      %v561 = vadd.f32 0.0, %v560
      %v562 = vpop.f32.mrb[0].mxu0
      %v563 = vpop.f32.mrb[0].mxu0
      %v564 = vadd.f32 0.0, %v563
      %v565 = vpop.f32.mrb[0].mxu0
      %566 = vdwg.mxu0
      %v567 = vadd.f32 %v455, %v561
      %v568 = vadd.f32 %v458, %v564
      %v569 = vld [vmem:[%s3] sm:$0x1]
      %v570 = vlaneseq
      %v571 = vshrl.u32 %v570, 7
      %v572 = vsub.s32 0, %v571
      %v573 = vrot.slane %v569, %v572
      %v574 = vadd.f32 %v567, %v573
      %v575 = vadd.f32 %v568, %v573
      %v576 = vmax.f32 %v574, 0.0
      %v577 = vmax.f32 %v575, 0.0
      %v578 = vrot.slane %v576, 7
      %v579 = vrot.slane %v577, 7
      %v580 = vsel %vm235, %v578, %v579
      %v581 = vsel %vm235, %v579, %v578
      %v582 = vsel %vm231, %v581, 0.0
      %v583 = vsel %vm232, %v580, 0.0
      %v584 = vrot.slane %v576, 1
      %v585 = vrot.slane %v577, 1
      %v586 = vsel %vm244, %v584, %v585
      %v587 = vsel %vm244, %v585, %v584
      %v588 = vsel %vm240, %v586, 0.0
      %v589 = vsel %vm241, %v587, 0.0
      %v590 = vpack.c.bf16 %v583, %v582
      %v591 = vld [vmem:[%s2] sm:$0xf]
      %v592 = vld [vmem:[%s2 + $0x4] sm:$0xf]
      %v593 = vld [vmem:[%s2 + $0x8] sm:$0xf]
      %v594 = vld [vmem:[%s2 + $0xc] sm:$0xf]
      %v595 = vld [vmem:[%s2 + $0x10] sm:$0xf]
      %v596 = vld [vmem:[%s2 + $0x14] sm:$0xf]
      %v597 = vld [vmem:[%s2 + $0x18] sm:$0xf]
      %v598 = vld [vmem:[%s2 + $0x1c] sm:$0xf]
      %v599 = vld [vmem:[%s2 + $0x20] sm:$0xf]
      %v600 = vld [vmem:[%s2 + $0x24] sm:$0xf]
      %v601 = vld [vmem:[%s2 + $0x28] sm:$0xf]
      %v602 = vld [vmem:[%s2 + $0x2c] sm:$0xf]
      %v603 = vld [vmem:[%s2 + $0x30] sm:$0xf]
      %v604 = vld [vmem:[%s2 + $0x34] sm:$0xf]
      %v605 = vld [vmem:[%s2 + $0x38] sm:$0xf]
      %v606 = vld [vmem:[%s2 + $0x3c] sm:$0xf]
      %v607 = vpack.c.bf16 %v577, %v576
      %v608 = vld [vmem:[%s2 + $0x40] sm:$0xf]
      %v609 = vld [vmem:[%s2 + $0x44] sm:$0xf]
      %v610 = vld [vmem:[%s2 + $0x48] sm:$0xf]
      %v611 = vld [vmem:[%s2 + $0x4c] sm:$0xf]
      %v612 = vld [vmem:[%s2 + $0x50] sm:$0xf]
      %v613 = vld [vmem:[%s2 + $0x54] sm:$0xf]
      %v614 = vld [vmem:[%s2 + $0x58] sm:$0xf]
      %v615 = vld [vmem:[%s2 + $0x5c] sm:$0xf]
      %v616 = vld [vmem:[%s2 + $0x60] sm:$0xf]
      %v617 = vld [vmem:[%s2 + $0x64] sm:$0xf]
      %v618 = vld [vmem:[%s2 + $0x68] sm:$0xf]
      %v619 = vld [vmem:[%s2 + $0x6c] sm:$0xf]
      %v620 = vld [vmem:[%s2 + $0x70] sm:$0xf]
      %v621 = vld [vmem:[%s2 + $0x74] sm:$0xf]
      %v622 = vld [vmem:[%s2 + $0x78] sm:$0xf]
      %v623 = vld [vmem:[%s2 + $0x7c] sm:$0xf]
      %v640 = vunpack.c.l.b16 %v608
      %v641 = vunpack.c.l.b16 %v609
      %v642 = vunpack.c.l.b16 %v610
      %v643 = vunpack.c.l.b16 %v611
      %v644 = vunpack.c.l.b16 %v612
      %v645 = vunpack.c.l.b16 %v613
      %v646 = vunpack.c.l.b16 %v614
      %v647 = vunpack.c.l.b16 %v615
      %v648 = vunpack.c.l.b16 %v616
      %v649 = vunpack.c.l.b16 %v617
      %v650 = vunpack.c.l.b16 %v618
      %v651 = vunpack.c.l.b16 %v619
      %v652 = vunpack.c.l.b16 %v620
      %v653 = vunpack.c.l.b16 %v621
      %v654 = vunpack.c.l.b16 %v622
      %v655 = vunpack.c.l.b16 %v623
      %v656 = vpack.c.b16 %v641, %v640
      %v657 = vpack.c.b16 %v643, %v642
      %v658 = vpack.c.b16 %v645, %v644
      %v659 = vpack.c.b16 %v647, %v646
      %v660 = vpack.c.b16 %v649, %v648
      %v661 = vpack.c.b16 %v651, %v650
      %v662 = vpack.c.b16 %v653, %v652
      %v663 = vpack.c.b16 %v655, %v654
      %672 = vmatprep.subr.bf16.mxu0 0
      %673 = vmatpush1.bf16.msra.mxu0 %v656
      %674 = vmatprep.subr.bf16.mxu0 0
      %675 = vmatpush1.bf16.msra.mxu0 %v657
      %676 = vmatprep.subr.bf16.mxu0 0
      %677 = vmatpush1.bf16.msra.mxu0 %v658
      %678 = vmatprep.subr.bf16.mxu0 0
      %679 = vmatpush1.bf16.msra.mxu0 %v659
      %680 = vmatprep.subr.bf16.mxu0 0
      %681 = vmatpush1.bf16.msra.mxu0 %v660
      %682 = vmatprep.subr.bf16.mxu0 0
      %683 = vmatpush1.bf16.msra.mxu0 %v661
      %684 = vmatprep.subr.bf16.mxu0 0
      %685 = vmatpush1.bf16.msra.mxu0 %v662
      %686 = vmatprep.subr.bf16.mxu0 0
      %687 = vmatpush1.bf16.msra.mxu0 %v663
      %688 = vmatprep.subr.bf16.mxu0 0
      %689 = vmatpush1.bf16.msra.mxu0 0
      %690 = vmatprep.subr.bf16.mxu0 0
      %691 = vmatpush1.bf16.msra.mxu0 0
      %692 = vmatprep.subr.bf16.mxu0 0
      %693 = vmatpush1.bf16.msra.mxu0 0
      %694 = vmatprep.subr.bf16.mxu0 0
      %695 = vmatpush1.bf16.msra.mxu0 0
      %696 = vmatprep.subr.bf16.mxu0 0
      %697 = vmatpush1.bf16.msra.mxu0 0
      %698 = vmatprep.subr.bf16.mxu0 0
      %699 = vmatpush1.bf16.msra.mxu0 0
      %700 = vmatprep.subr.bf16.mxu0 0
      %701 = vmatpush1.bf16.msra.mxu0 0
      %702 = vmatprep.subr.bf16.mxu0 0
      %703 = vmatpush1.bf16.msra.mxu0 0
      %704 = vmatprep.mubr.bf16.mxu0 0
      %705 = vmatmul.mubr.bf16.gmra.mrb[0].mxu0 %v607
      %v706 = vpop.f32.mrb[0].mxu0
      %v707 = vadd.f32 0.0, %v706
      %v708 = vpop.f32.mrb[0].mxu0
      %v709 = vpop.f32.mrb[0].mxu0
      %v710 = vadd.f32 0.0, %v709
      %v711 = vpop.f32.mrb[0].mxu0
      %712 = vdwg.mxu0
      %v729 = vunpack.c.l.b16 %v591
      %v730 = vunpack.c.l.b16 %v592
      %v731 = vunpack.c.l.b16 %v593
      %v732 = vunpack.c.l.b16 %v594
      %v733 = vunpack.c.l.b16 %v595
      %v734 = vunpack.c.l.b16 %v596
      %v735 = vunpack.c.l.b16 %v597
      %v736 = vunpack.c.l.b16 %v598
      %v737 = vunpack.c.l.b16 %v599
      %v738 = vunpack.c.l.b16 %v600
      %v739 = vunpack.c.l.b16 %v601
      %v740 = vunpack.c.l.b16 %v602
      %v741 = vunpack.c.l.b16 %v603
      %v742 = vunpack.c.l.b16 %v604
      %v743 = vunpack.c.l.b16 %v605
      %v744 = vunpack.c.l.b16 %v606
      %v745 = vpack.c.b16 %v730, %v729
      %v746 = vpack.c.b16 %v732, %v731
      %v747 = vpack.c.b16 %v734, %v733
      %v748 = vpack.c.b16 %v736, %v735
      %v749 = vpack.c.b16 %v738, %v737
      %v750 = vpack.c.b16 %v740, %v739
      %v751 = vpack.c.b16 %v742, %v741
      %v752 = vpack.c.b16 %v744, %v743
      %761 = vmatprep.subr.bf16.mxu0 0
      %762 = vmatpush1.bf16.msra.mxu0 %v745
      %763 = vmatprep.subr.bf16.mxu0 0
      %764 = vmatpush1.bf16.msra.mxu0 %v746
      %765 = vmatprep.subr.bf16.mxu0 0
      %766 = vmatpush1.bf16.msra.mxu0 %v747
      %767 = vmatprep.subr.bf16.mxu0 0
      %768 = vmatpush1.bf16.msra.mxu0 %v748
      %769 = vmatprep.subr.bf16.mxu0 0
      %770 = vmatpush1.bf16.msra.mxu0 %v749
      %771 = vmatprep.subr.bf16.mxu0 0
      %772 = vmatpush1.bf16.msra.mxu0 %v750
      %773 = vmatprep.subr.bf16.mxu0 0
      %774 = vmatpush1.bf16.msra.mxu0 %v751
      %775 = vmatprep.subr.bf16.mxu0 0
      %776 = vmatpush1.bf16.msra.mxu0 %v752
      %777 = vmatprep.subr.bf16.mxu0 0
      %778 = vmatpush1.bf16.msra.mxu0 0
      %779 = vmatprep.subr.bf16.mxu0 0
      %780 = vmatpush1.bf16.msra.mxu0 0
      %781 = vmatprep.subr.bf16.mxu0 0
      %782 = vmatpush1.bf16.msra.mxu0 0
      %783 = vmatprep.subr.bf16.mxu0 0
      %784 = vmatpush1.bf16.msra.mxu0 0
      %785 = vmatprep.subr.bf16.mxu0 0
      %786 = vmatpush1.bf16.msra.mxu0 0
      %787 = vmatprep.subr.bf16.mxu0 0
      %788 = vmatpush1.bf16.msra.mxu0 0
      %789 = vmatprep.subr.bf16.mxu0 0
      %790 = vmatpush1.bf16.msra.mxu0 0
      %791 = vmatprep.subr.bf16.mxu0 0
      %792 = vmatpush1.bf16.msra.mxu0 0
      %793 = vmatprep.mubr.bf16.mxu0 0
      %794 = vmatmul.mubr.bf16.gmra.mrb[0].mxu0 %v590
      %v795 = vpop.f32.mrb[0].mxu0
      %v796 = vadd.f32 %v707, %v795
      %v797 = vpop.f32.mrb[0].mxu0
      %v798 = vpop.f32.mrb[0].mxu0
      %v799 = vadd.f32 %v710, %v798
      %v800 = vpop.f32.mrb[0].mxu0
      %801 = vdwg.mxu0
      %v802 = vpack.c.bf16 %v589, %v588
      %v803 = vld [vmem:[%s2 + $0x80] sm:$0xf]
      %v804 = vld [vmem:[%s2 + $0x84] sm:$0xf]
      %v805 = vld [vmem:[%s2 + $0x88] sm:$0xf]
      %v806 = vld [vmem:[%s2 + $0x8c] sm:$0xf]
      %v807 = vld [vmem:[%s2 + $0x90] sm:$0xf]
      %v808 = vld [vmem:[%s2 + $0x94] sm:$0xf]
      %v809 = vld [vmem:[%s2 + $0x98] sm:$0xf]
      %v810 = vld [vmem:[%s2 + $0x9c] sm:$0xf]
      %v811 = vld [vmem:[%s2 + $0xa0] sm:$0xf]
      %v812 = vld [vmem:[%s2 + $0xa4] sm:$0xf]
      %v813 = vld [vmem:[%s2 + $0xa8] sm:$0xf]
      %v814 = vld [vmem:[%s2 + $0xac] sm:$0xf]
      %v815 = vld [vmem:[%s2 + $0xb0] sm:$0xf]
      %v816 = vld [vmem:[%s2 + $0xb4] sm:$0xf]
      %v817 = vld [vmem:[%s2 + $0xb8] sm:$0xf]
      %v818 = vld [vmem:[%s2 + $0xbc] sm:$0xf]
      %v835 = vunpack.c.l.b16 %v803
      %v836 = vunpack.c.l.b16 %v804
      %v837 = vunpack.c.l.b16 %v805
      %v838 = vunpack.c.l.b16 %v806
      %v839 = vunpack.c.l.b16 %v807
      %v840 = vunpack.c.l.b16 %v808
      %v841 = vunpack.c.l.b16 %v809
      %v842 = vunpack.c.l.b16 %v810
      %v843 = vunpack.c.l.b16 %v811
      %v844 = vunpack.c.l.b16 %v812
      %v845 = vunpack.c.l.b16 %v813
      %v846 = vunpack.c.l.b16 %v814
      %v847 = vunpack.c.l.b16 %v815
      %v848 = vunpack.c.l.b16 %v816
      %v849 = vunpack.c.l.b16 %v817
      %v850 = vunpack.c.l.b16 %v818
      %v851 = vpack.c.b16 %v836, %v835
      %v852 = vpack.c.b16 %v838, %v837
      %v853 = vpack.c.b16 %v840, %v839
      %v854 = vpack.c.b16 %v842, %v841
      %v855 = vpack.c.b16 %v844, %v843
      %v856 = vpack.c.b16 %v846, %v845
      %v857 = vpack.c.b16 %v848, %v847
      %v858 = vpack.c.b16 %v850, %v849
      %867 = vmatprep.subr.bf16.mxu0 0
      %868 = vmatpush1.bf16.msra.mxu0 %v851
      %869 = vmatprep.subr.bf16.mxu0 0
      %870 = vmatpush1.bf16.msra.mxu0 %v852
      %871 = vmatprep.subr.bf16.mxu0 0
      %872 = vmatpush1.bf16.msra.mxu0 %v853
      %873 = vmatprep.subr.bf16.mxu0 0
      %874 = vmatpush1.bf16.msra.mxu0 %v854
      %875 = vmatprep.subr.bf16.mxu0 0
      %876 = vmatpush1.bf16.msra.mxu0 %v855
      %877 = vmatprep.subr.bf16.mxu0 0
      %878 = vmatpush1.bf16.msra.mxu0 %v856
      %879 = vmatprep.subr.bf16.mxu0 0
      %880 = vmatpush1.bf16.msra.mxu0 %v857
      %881 = vmatprep.subr.bf16.mxu0 0
      %882 = vmatpush1.bf16.msra.mxu0 %v858
      %883 = vmatprep.subr.bf16.mxu0 0
      %884 = vmatpush1.bf16.msra.mxu0 0
      %885 = vmatprep.subr.bf16.mxu0 0
      %886 = vmatpush1.bf16.msra.mxu0 0
      %887 = vmatprep.subr.bf16.mxu0 0
      %888 = vmatpush1.bf16.msra.mxu0 0
      %889 = vmatprep.subr.bf16.mxu0 0
      %890 = vmatpush1.bf16.msra.mxu0 0
      %891 = vmatprep.subr.bf16.mxu0 0
      %892 = vmatpush1.bf16.msra.mxu0 0
      %893 = vmatprep.subr.bf16.mxu0 0
      %894 = vmatpush1.bf16.msra.mxu0 0
      %895 = vmatprep.subr.bf16.mxu0 0
      %896 = vmatpush1.bf16.msra.mxu0 0
      %897 = vmatprep.subr.bf16.mxu0 0
      %898 = vmatpush1.bf16.msra.mxu0 0
      %899 = vmatprep.mubr.bf16.mxu0 0
      %900 = vmatmul.mubr.bf16.gmra.mrb[0].mxu0 %v802
      %v901 = vpop.f32.mrb[0].mxu0
      %v902 = vadd.f32 0.0, %v901
      %v903 = vpop.f32.mrb[0].mxu0
      %v904 = vpop.f32.mrb[0].mxu0
      %v905 = vadd.f32 0.0, %v904
      %v906 = vpop.f32.mrb[0].mxu0
      %907 = vdwg.mxu0
      %v908 = vadd.f32 %v796, %v902
      %v909 = vadd.f32 %v799, %v905
      %v910 = vld [vmem:[%s3 + $0x1] sm:$0x1]
      %v911 = vlaneseq
      %v912 = vshrl.u32 %v911, 7
      %v913 = vsub.s32 0, %v912
      %v914 = vrot.slane %v910, %v913
      %v915 = vadd.f32 %v908, %v914
      %v916 = vadd.f32 %v909, %v914
      %v917 = vadd.f32 %v915, %v202
      %v918 = vadd.f32 %v916, %v203
      %v919 = vmax.f32 %v917, 0.0
      %v920 = vmax.f32 %v918, 0.0
      %921 = vst [vmem:[%s199] sm:$0xff] %v919
      %922 = vst [vmem:[%s199 + $0x8] sm:$0xff] %v920
      %s923 = smul.u32 2, %s15
      %p924 = scmp.lt.s32.totalorder %s923, 3
      %s925 = scalar_select %p924, %s923, 3
      %s926 = smul.addr %s925, 8
      %s927 = scalar_lea.vmem %s4, %s926
      // Predicated region
      $region37: #{basic_block_nhwc.1} parent=35 // pred_check
        %p928 = pneg %p122
      $region38: #{basic_block_nhwc.1} parent=35 // pred_check_branch
        %930 = sbr.rel (%p928) target = $region40
      $region39: #{basic_block_nhwc.1} parent=35 // pred_region
        %s931 = smul.u32 2, %s15
      $region40: #{basic_block_nhwc.1} parent=35 // pred_fallthru
        _
    $region36: #{basic_block_nhwc.1} parent=5 // pred_fallthru
      _
    %p932 = scmp.le.s32.totalorder 2, %s10
    // Predicated region
    $region41: #{basic_block_nhwc.1} parent=5 // pred_check
      %p933 = pneg %p932
    $region42: #{basic_block_nhwc.1} parent=5 // pred_check_branch
      %935 = sbr.rel (%p933) target = $region44
    $region43: #{basic_block_nhwc.1} parent=5 // pred_region
      %s936 = ssub.s32 %s10, 2
      // Predicated region
      $region45: #{basic_block_nhwc.1} parent=43 // pred_check
        %p937 = pneg %p128
      $region46: #{basic_block_nhwc.1} parent=43 // pred_check_branch
        %939 = sbr.rel (%p937) target = $region48
      $region47: #{basic_block_nhwc.1} parent=43 // pred_region
        %s940 = smul.u32 2, %s16
        %p941 = scmp.lt.s32.totalorder %s940, 3
        %s942 = scalar_select %p941, %s940, 3
        %s943 = smul.addr %s942, 8
        %s944 = scalar_lea.vmem %s4, %s943
      $region48: #{basic_block_nhwc.1} parent=43 // pred_fallthru
        _
    $region44: #{basic_block_nhwc.1} parent=5 // pred_fallthru
      _
  $region6: #{basic_block_nhwc.1} parent=0 // loop_footer
    %s14 = sadd.s32 1, %s10
  $region7: #{basic_block_nhwc.1} parent=0 // loop_footer_branch
    %9 = sbr.rel target = $region3
  $region8: #{basic_block_nhwc.1} parent=0 // loop_exit
    _

</llo_original>
